<compile_context>
chip_gen: v5e
topology: v5e:2x2
jax: 0.10.0
libtpu: 0.0.40
codegen_flags: <defaults>
</compile_context>

<pallas_src>
import jax
import jax.numpy as jnp
from jax import lax
from jax.experimental import pallas as pl
from jax.experimental.pallas import tpu as pltpu

# ---- synthetic stand-in for the external `run_time` config -----------------
ALL_AUXILIARY_TASK_LIST = ["cls_task", "ner_task", "mrc_task", "other_task"]
AUXILIARY_TASK_TYPE_MAP = {
    "cls_task": "CLS",
    "ner_task": "NER",
    "mrc_task": "MRC",
    "other_task": "OTHER",   # exercises the class_weight branch
}

_VMEM_BUDGET = 32 * 1024 * 1024          # input double-buffer + temps target
_VMEM_LIMIT = 48 * 1024 * 1024           # scoped limit: > v5e/v6e defaults, < v7x 64 MiB phys
_LANES = 128


def _pick_tm(n_rows, n_classes, in_itemsize):
    """Row tile: as large as fits the VMEM budget (256-1024 for realistic C)."""
    # 2x for the double-buffered input block, ~4 f32-sized temps (x, exp, onehot, iota)
    per_row = 2 * n_classes * in_itemsize + 4 * n_classes * 4
    tm = _VMEM_BUDGET // max(per_row, 1)
    tm = int(max(8, min(1024, tm)))
    tm -= tm % 8
    n_pad8 = ((n_rows + 7) // 8) * 8
    return int(max(8, min(tm, n_pad8)))


# ---- Pallas kernel factory: per-block weighted cross-entropy partial sums ---
def _make_ce_kernel(n_rows, tm, n_classes, use_cw):
    def kernel(*refs):
        if use_cw:
            logits_ref, tgt_ref, cw_ref, loss_ref, wsum_ref = refs
        else:
            logits_ref, tgt_ref, loss_ref, wsum_ref = refs

        i = pl.program_id(0)
        row = lax.broadcasted_iota(jnp.int32, (tm, 1), 0) + i * tm
        valid = row < n_rows                                   # (tm,1) bool; masks ragged rows

        # select (not multiply) so OOB/pad garbage can never produce NaN*0
        x = jnp.where(valid, logits_ref[...].astype(jnp.float32), 0.0)   # (tm, C) f32
        t = tgt_ref[...]                                       # (tm, 1) int32

        # numerically-stable log-sum-exp over the class (lane) dim
        m = jnp.max(x, axis=-1, keepdims=True)
        lse = m + jnp.log(jnp.sum(jnp.exp(x - m), axis=-1, keepdims=True))

        # gather logits[target] (and class_weight[target]) via one-hot lane select
        col = lax.broadcasted_iota(jnp.int32, (tm, n_classes), 1)
        onehot = (col == t).astype(jnp.float32)
        picked = jnp.sum(x * onehot, axis=-1, keepdims=True)

        if use_cw:
            w = jnp.where(valid,
                          jnp.sum(cw_ref[...] * onehot, axis=-1, keepdims=True),
                          0.0)                                 # (tm,1)
        else:
            w = valid.astype(jnp.float32)                      # unit weight per valid row

        per = (lse - picked) * w

        # lane-dense per-block partials; reduced once in the wrapper (parallel grid axis)
        loss_ref[...] = jnp.full((1, _LANES), jnp.sum(per), jnp.float32)
        wsum_ref[...] = jnp.full((1, _LANES), jnp.sum(w), jnp.float32)

    return kernel


def _pallas_cross_entropy_sums(logits, targets, class_weight=None):
    """Returns (sum_i w_i * nll_i, sum_i w_i) matching F.cross_entropy's 'mean' pieces."""
    logits = jnp.asarray(logits)
    if not jnp.issubdtype(logits.dtype, jnp.floating):
        logits = logits.astype(jnp.float32)
    targets2d = jnp.asarray(targets, jnp.int32).reshape(-1, 1)

    N, C = logits.shape
    itemsize = jnp.dtype(logits.dtype).itemsize
    TM = _pick_tm(N, C, itemsize)

    logits_in, tgt_in = logits, targets2d
    if N < TM:
        # single block smaller than the tile: pad a handful of rows so the DMA is
        # fully in-bounds (deterministic); padded rows are masked in-kernel (row >= N)
        pad = TM - N
        logits_in = jnp.pad(logits_in, ((0, pad), (0, 0)))
        tgt_in = jnp.pad(tgt_in, ((0, pad), (0, 0)))
    G = pl.cdiv(N, TM)

    use_cw = class_weight is not None
    in_specs = [
        pl.BlockSpec((TM, C), lambda i: (i, 0)),   # class dim = full C (no class padding)
        pl.BlockSpec((TM, 1), lambda i: (i, 0)),
    ]
    args = [logits_in, tgt_in]
    if use_cw:
        cw = jnp.asarray(class_weight, jnp.float32).reshape(1, C)
        in_specs.append(pl.BlockSpec((1, C), lambda i: (0, 0)))
        args.append(cw)

    loss_parts, w_parts = pl.pallas_call(
        _make_ce_kernel(N, TM, C, use_cw),
        out_shape=(jax.ShapeDtypeStruct((1, G * _LANES), jnp.float32),
                   jax.ShapeDtypeStruct((1, G * _LANES), jnp.float32)),
        grid_spec=pltpu.PrefetchScalarGridSpec(
            num_scalar_prefetch=0,
            grid=(G,),
            in_specs=in_specs,
            out_specs=(pl.BlockSpec((1, _LANES), lambda i: (0, i)),
                       pl.BlockSpec((1, _LANES), lambda i: (0, i))),
        ),
        compiler_params=pltpu.CompilerParams(
            dimension_semantics=("parallel",),
            vmem_limit_bytes=_VMEM_LIMIT),
    )(*args)

    loss_sum = jnp.sum(loss_parts.reshape(G, _LANES)[:, 0])
    w_sum = jnp.sum(w_parts.reshape(G, _LANES)[:, 0])
    return loss_sum, w_sum


def _pallas_cross_entropy(logits, targets, class_weight=None):
    """F.cross_entropy(logits (N,C), targets (N,), weight=class_weight, reduction='mean')."""
    loss_sum, w_sum = _pallas_cross_entropy_sums(logits, targets, class_weight)
    return loss_sum / w_sum


# ---- module equivalent ------------------------------------------------------
class MultiTaskLoss:
    def __init__(self):
        self.task_num = len(ALL_AUXILIARY_TASK_LIST)

    def __call__(self, main_task_id, task_id, prediction, targets, task_weight,
                 class_weight=None):
        task_name = (ALL_AUXILIARY_TASK_LIST[task_id]
                     if task_id < len(ALL_AUXILIARY_TASK_LIST)
                     else ALL_AUXILIARY_TASK_LIST[0])
        ttype = AUXILIARY_TASK_TYPE_MAP[task_name]

        if ttype == "NER" and prediction.ndim == 3:
            # (B, L, C) -> permute(0,2,1) + CE over class dim == flatten to (B*L, C)
            B, L, C = prediction.shape
            prediction = prediction.reshape(B * L, C)
            targets = targets.reshape(B * L)

        if ttype == "MRC":
            # fuse start/end CE into ONE kernel launch: stack rows of both problems.
            # tw*mean(start) + tw*mean(end) == tw * 2 * total_sum / (2B)  (equal counts)
            two, B, S = prediction.shape
            logits2 = prediction.reshape(two * B, S)
            tgts2 = jnp.transpose(jnp.asarray(targets)).reshape(-1)
            loss_sum, w_sum = _pallas_cross_entropy_sums(logits2, tgts2)
            loss = task_weight * 2.0 * loss_sum / w_sum
        elif ttype in ("NER", "CLS"):
            # NOTE: class_weight is intentionally ignored here (mirrors original control flow)
            loss = task_weight * _pallas_cross_entropy(prediction, targets)
        elif class_weight is not None:
            loss = task_weight * _pallas_cross_entropy(prediction, targets,
                                                       class_weight=class_weight)
        else:
            loss = task_weight * _pallas_cross_entropy(prediction, targets)
        return loss


# ---- pure-JAX reference for a sanity check ----------------------------------
def _ref_ce(logits, targets, cw=None):
    logits = jnp.asarray(logits, jnp.float32)
    targets = jnp.asarray(targets, jnp.int32)
    lse = jax.scipy.special.logsumexp(logits, axis=-1)
    picked = jnp.take_along_axis(logits, targets[:, None], axis=-1)[:, 0]
    per = lse - picked
    if cw is None:
        return jnp.mean(per)
    w = jnp.asarray(cw, jnp.float32)[targets]
    return jnp.sum(per * w) / jnp.sum(w)


if __name__ == "__main__":
    key = jax.random.PRNGKey(0)
    k_cls, k_ner, k_mrc0, k_mrc1, k_tc, k_tn, k_tm, k_oth, k_to = jax.random.split(key, 9)

    loss_fn = MultiTaskLoss()
    task_weight = 0.5

    # CLS: logits (B=4, C=7), targets (4,)
    cls_logits = jax.random.normal(k_cls, (4, 7), jnp.float32)
    cls_tgt = jax.random.randint(k_tc, (4,), 0, 7)
    l_cls = loss_fn(0, 0, cls_logits, cls_tgt, task_weight)
    r_cls = task_weight * _ref_ce(cls_logits, cls_tgt)

    # CLS with bf16 logits (kernel accepts bf16, upcasts in VMEM)
    cls_bf16 = cls_logits.astype(jnp.bfloat16)
    l_b16 = loss_fn(0, 0, cls_bf16, cls_tgt, task_weight)
    r_b16 = task_weight * _ref_ce(cls_bf16.astype(jnp.float32), cls_tgt)

    # NER: logits (B=2, L=8, C=5), targets (2, 8)
    ner_logits = jax.random.normal(k_ner, (2, 8, 5), jnp.float32)
    ner_tgt = jax.random.randint(k_tn, (2, 8), 0, 5)
    l_ner = loss_fn(0, 1, ner_logits, ner_tgt, task_weight)
    r_ner = task_weight * _ref_ce(ner_logits.reshape(16, 5), ner_tgt.reshape(16))

    # MRC: prediction (2, B=2, S=16) start/end logits, targets (2, 2)
    mrc_logits = jnp.stack([jax.random.normal(k_mrc0, (2, 16), jnp.float32),
                            jax.random.normal(k_mrc1, (2, 16), jnp.float32)])
    mrc_tgt = jax.random.randint(k_tm, (2, 2), 0, 16)
    l_mrc = loss_fn(0, 2, mrc_logits, mrc_tgt, task_weight)
    r_mrc = (task_weight * _ref_ce(mrc_logits[0], mrc_tgt[:, 0])
             + task_weight * _ref_ce(mrc_logits[1], mrc_tgt[:, 1]))

    # OTHER + class_weight: logits (4, 7), targets (4,)
    oth_logits = jax.random.normal(k_oth, (4, 7), jnp.float32)
    oth_tgt = jax.random.randint(k_to, (4,), 0, 7)
    class_weight = [0.5, 1.0, 2.0, 1.5, 0.25, 1.0, 3.0]
    l_oth = loss_fn(0, 3, oth_logits, oth_tgt, task_weight, class_weight=class_weight)
    r_oth = task_weight * _ref_ce(oth_logits, oth_tgt, cw=class_weight)

    results = jax.block_until_ready((l_cls, l_b16, l_ner, l_mrc, l_oth))
    refs = (r_cls, r_b16, r_ner, r_mrc, r_oth)
    for got, ref in zip(results, refs):
        assert jnp.allclose(got, ref, rtol=1e-3, atol=1e-5), (got, ref)

    print("KERNEL_OK")
</pallas_src>

<mosaic_0001>
module attributes {stable_mosaic.version = 11 : i64} {
  func.func @kernel(%arg0: i32, %arg1: memref<8x7xf32, #tpu.memory_space<vmem>>, %arg2: memref<8x1xi32, #tpu.memory_space<vmem>>, %arg3: memref<1x128xf32, #tpu.memory_space<vmem>>, %arg4: memref<1x128xf32, #tpu.memory_space<vmem>>) attributes {dimension_semantics = [#tpu.dimension_semantics<parallel>], iteration_bounds = array<i64: 1>, scalar_prefetch = 0 : i64, scratch_operands = 0 : i64, tpu.core_type = #tpu.core_type<tc>, window_params = [{transform_indices = @transform_0, window_bounds = array<i64: 8, 7>}, {transform_indices = @transform_1, window_bounds = array<i64: 8, 1>}, {transform_indices = @transform_2, window_bounds = array<i64: 1, 128>}, {transform_indices = @transform_3, window_bounds = array<i64: 1, 128>}]} {
    %0 = tpu.iota {dimensions = array<i32: 0>} : vector<8x1xi32>
    %c8_i32 = arith.constant 8 : i32
    %1 = arith.muli %arg0, %c8_i32 : i32
    %2 = vector.broadcast %1 : i32 to vector<8x1xi32>
    %3 = arith.addi %0, %2 : vector<8x1xi32>
    %c4_i32 = arith.constant 4 : i32
    %4 = vector.broadcast %c4_i32 : i32 to vector<8x1xi32>
    %5 = arith.cmpi slt, %3, %4 : vector<8x1xi32>
    %c0 = arith.constant 0 : index
    %c0_0 = arith.constant 0 : index
    %6 = vector.load %arg1[%c0, %c0_0] : memref<8x7xf32, #tpu.memory_space<vmem>>, vector<8x7xf32>
    %cst = arith.constant 0.000000e+00 : f32
    %7 = vector.shape_cast %5 : vector<8x1xi1> to vector<8x1xi1>
    %8 = vector.broadcast %7 : vector<8x1xi1> to vector<8x7xi1>
    %9 = vector.broadcast %cst : f32 to vector<8x7xf32>
    %10 = arith.select %8, %6, %9 : vector<8x7xi1>, vector<8x7xf32>
    %c0_1 = arith.constant 0 : index
    %c0_2 = arith.constant 0 : index
    %11 = vector.load %arg2[%c0_1, %c0_2] : memref<8x1xi32, #tpu.memory_space<vmem>>, vector<8x1xi32>
    %cst_3 = arith.constant dense<0xFF800000> : vector<8xf32>
    %12 = vector.multi_reduction <maximumf>, %10, %cst_3 [1] : vector<8x7xf32> to vector<8xf32>
    %13 = vector.shape_cast %12 : vector<8xf32> to vector<8x1xf32>
    %14 = vector.broadcast %13 : vector<8x1xf32> to vector<8x7xf32>
    %15 = arith.subf %10, %14 : vector<8x7xf32>
    %16 = math.exp %15 : vector<8x7xf32>
    %cst_4 = arith.constant dense<0.000000e+00> : vector<8xf32>
    %17 = vector.multi_reduction <add>, %16, %cst_4 [1] : vector<8x7xf32> to vector<8xf32>
    %18 = vector.shape_cast %17 : vector<8xf32> to vector<8x1xf32>
    %19 = math.log %18 : vector<8x1xf32>
    %20 = arith.addf %13, %19 : vector<8x1xf32>
    %21 = tpu.iota {dimensions = array<i32: 1>} : vector<8x7xi32>
    %22 = vector.broadcast %11 : vector<8x1xi32> to vector<8x7xi32>
    %23 = arith.cmpi eq, %21, %22 : vector<8x7xi32>
    %24 = arith.extui %23 : vector<8x7xi1> to vector<8x7xi32>
    %25 = arith.sitofp %24 : vector<8x7xi32> to vector<8x7xf32>
    %26 = arith.mulf %10, %25 : vector<8x7xf32>
    %cst_5 = arith.constant dense<0.000000e+00> : vector<8xf32>
    %27 = vector.multi_reduction <add>, %26, %cst_5 [1] : vector<8x7xf32> to vector<8xf32>
    %28 = vector.shape_cast %27 : vector<8xf32> to vector<8x1xf32>
    %29 = arith.extui %5 : vector<8x1xi1> to vector<8x1xi32>
    %30 = arith.sitofp %29 : vector<8x1xi32> to vector<8x1xf32>
    %31 = arith.subf %20, %28 : vector<8x1xf32>
    %32 = arith.mulf %31, %30 : vector<8x1xf32>
    %33 = vector.shape_cast %32 : vector<8x1xf32> to vector<1x8x1xf32>
    %cst_6 = arith.constant dense<0.000000e+00> : vector<1xf32>
    %34 = vector.multi_reduction <add>, %33, %cst_6 [1, 2] : vector<1x8x1xf32> to vector<1xf32>
    %35 = vector.shape_cast %34 : vector<1xf32> to vector<1x1x1xf32>
    %36 = vector.extract %35[0, 0, 0] : f32 from vector<1x1x1xf32>
    %37 = vector.broadcast %36 : f32 to vector<1x128xf32>
    %c0_7 = arith.constant 0 : index
    %c0_8 = arith.constant 0 : index
    %38 = vector.load %arg3[%c0_7, %c0_8] : memref<1x128xf32, #tpu.memory_space<vmem>>, vector<1x128xf32>
    tpu.vector_store %arg3[%c0_7, %c0_8], %37 {strides = array<i32>} : memref<1x128xf32, #tpu.memory_space<vmem>>, vector<1x128xf32>,
    %39 = vector.shape_cast %30 : vector<8x1xf32> to vector<1x8x1xf32>
    %cst_9 = arith.constant dense<0.000000e+00> : vector<1xf32>
    %40 = vector.multi_reduction <add>, %39, %cst_9 [1, 2] : vector<1x8x1xf32> to vector<1xf32>
    %41 = vector.shape_cast %40 : vector<1xf32> to vector<1x1x1xf32>
    %42 = vector.extract %41[0, 0, 0] : f32 from vector<1x1x1xf32>
    %43 = vector.broadcast %42 : f32 to vector<1x128xf32>
    %c0_10 = arith.constant 0 : index
    %c0_11 = arith.constant 0 : index
    %44 = vector.load %arg4[%c0_10, %c0_11] : memref<1x128xf32, #tpu.memory_space<vmem>>, vector<1x128xf32>
    tpu.vector_store %arg4[%c0_10, %c0_11], %43 {strides = array<i32>} : memref<1x128xf32, #tpu.memory_space<vmem>>, vector<1x128xf32>,
    return
  }
  func.func @transform_0(%arg0: i32) -> (i32, i32) {
    %c0_i32 = arith.constant 0 : i32
    %c0_i32_0 = arith.constant 0 : i32
    return %arg0, %c0_i32 : i32, i32
  }
  func.func @transform_1(%arg0: i32) -> (i32, i32) {
    %c0_i32 = arith.constant 0 : i32
    %c0_i32_0 = arith.constant 0 : i32
    return %arg0, %c0_i32 : i32, i32
  }
  func.func @transform_2(%arg0: i32) -> (i32, i32) {
    %c0_i32 = arith.constant 0 : i32
    %c0_i32_0 = arith.constant 0 : i32
    return %c0_i32, %arg0 : i32, i32
  }
  func.func @transform_3(%arg0: i32) -> (i32, i32) {
    %c0_i32 = arith.constant 0 : i32
    %c0_i32_0 = arith.constant 0 : i32
    return %c0_i32, %arg0 : i32, i32
  }
}

</mosaic_0001>

<llo_original>
// kernel: tpu_custom_call.1
$region0: #{tpu_custom_call.1}
  #allocation0 [shape = 'u32[]', space=smem, size = 0x4, offset = 0x4, fixed_abs, tag = 'smem constant byte address 0x4 - core index']
  #allocation1 [shape = 'u32[72,128]{1,0:T(1,128)}', space=vmem, size = 0x9000, scoped, tag = 'internal scratch']
  %s0 = inlined_call_operand.vmem [shape: f32[8,7], index: 0, kind: input, shape index: {}]
  %s1 = inlined_call_operand.vmem [shape: s32[8,1], index: 1, kind: input, shape index: {}]
  %s2 = inlined_call_operand.hbm [shape: f32[1,128], index: 2, kind: output, shape index: {0}]
  %s3 = inlined_call_operand.hbm [shape: f32[1,128], index: 3, kind: output, shape index: {1}]
  %4 = xla_tuple %s2, %s3
  %s5 = sld [smem:[#allocation0]]
  $region26: #{tpu_custom_call.1} parent=0
    _
  %s7 = ssub.s32 1, %s5
  %s8 = scalar_select 0, %s7, %s5
  $region1: #{tpu_custom_call.1} parent=0
    #allocation2 [shape = 'u8[512]{0}', space=vmem, size = 0x400, scoped, tag = 'output window, operand 0, single buffered']
    #allocation3 [shape = 's32[1]{0}', space=sflag, size = 0x4, scoped, tag = 'scoped memory for tpu_custom_call.1']
    #allocation4 [shape = 'u8[512]{0}', space=vmem, size = 0x400, scoped, tag = 'output window, operand 1, single buffered']
    #allocation5 [shape = 's32[1]{0}', space=sflag, size = 0x4, scoped, tag = 'scoped memory for tpu_custom_call.1']
    %9 = vsyncpa [#allocation3], 0
    %10 = vsyncpa [#allocation5], 0
    // Predicated region
    $region2: #{tpu_custom_call.1} parent=1 // pred_check
      _
    $region3: #{tpu_custom_call.1} parent=1 // pred_check_branch
      %12 = sbr.rel (0) target = $region5
    $region4: #{tpu_custom_call.1} parent=1 // pred_region
      _
    $region5: #{tpu_custom_call.1} parent=1 // pred_fallthru
      _
    // Predicated region
    $region6: #{tpu_custom_call.1} parent=1 // pred_check
      _
    $region7: #{tpu_custom_call.1} parent=1 // pred_check_branch
      %14 = sbr.rel (0) target = $region9
    $region8: #{tpu_custom_call.1} parent=1 // pred_region
      _
    $region9: #{tpu_custom_call.1} parent=1 // pred_fallthru
      _
    %v15 = vlaneseq
    %v16 = vshrl.u32 %v15, 7
    %s17 = smul.u32 0, 8
    %v18 = vstv %s17
    %v19 = vadd.s32 %v16, %v18
    %vm20 = vcmp.lt.s32.totalorder %v19, 4
    %v21 = vld [vmem:[%s0] sm:$0xff]
    %v22 = vsel %vm20, 1, 0
    %vm23 = vcmp.eq.s32.totalorder %v22, 1
    %v24 = vsel %vm23, %v21, 0.0
    %v25 = vld [vmem:[%s1] sm:$0xff]
    %vm26 = vcmask 56320
    %v27 = vsel %vm26, %v24, -inf
    %28 = vmax.xlane.f32.xlu0 %v27
    %v29 = vpop.xlane.xlu0 %28
    %v30 = vsub.f32 %v24, %v29
    %v31 = vmul.f32 %v30, 1.442695
    %v32 = vpow.pop %v31
    %v33 = vsel %vm26, %v32, 0.0
    %34 = vadd.xlane.f32.xlu0 %v33
    %v35 = vpop.xlane.xlu0 %34
    %v36 = vlog2.pop %v35
    %v37 = vmul.f32 %v36, 0.6931472
    %v38 = vadd.f32 %v29, %v37
    %v39 = vlaneseq
    %v40 = vand.u32 %v39, 127
    %41 = vset.pattern.permute.xlu0 0
    %42 = vperm.xlu0 %41, %v25
    %v43 = vpop.permute.xlu0 %42
    %vm44 = vcmp.eq.s32.totalorder %v40, %v43
    %v45 = vsel %vm44, 1, 0
    %v46 = vcvt.s32.f32 %v45
    %v47 = vmul.f32 %v24, %v46
    %v48 = vsel %vm26, %v47, 0.0
    %49 = vadd.xlane.f32.xlu0 %v48
    %v50 = vpop.xlane.xlu0 %49
    %v51 = vcvt.s32.f32 %v22
    %v52 = vsub.f32 %v38, %v50
    %v53 = vmul.f32 %v52, %v51
    %vm54 = vcmask 7168
    %v55 = vsel %vm54, %v53, 0.0
    %56 = vadd.xlane.f32.xlu0 %v55
    %v57 = vpop.xlane.xlu0 %56
    %v58 = vrot.slane %v57, 4
    %v59 = vadd.f32 %v57, %v58
    %v60 = vrot.slane %v59, 2
    %v61 = vadd.f32 %v59, %v60
    %v62 = vrot.slane %v61, 1
    %v63 = vadd.f32 %v61, %v62
    %s64 = vtos %v63
    %v65 = vstv %s64
    %66 = vst [vmem:[#allocation2] sm:$0x1] %v65
    %v67 = vsel %vm54, %v51, 0.0
    %68 = vadd.xlane.f32.xlu0 %v67
    %v69 = vpop.xlane.xlu0 %68
    %v70 = vrot.slane %v69, 4
    %v71 = vadd.f32 %v69, %v70
    %v72 = vrot.slane %v71, 2
    %v73 = vadd.f32 %v71, %v72
    %v74 = vrot.slane %v73, 1
    %v75 = vadd.f32 %v73, %v74
    %s76 = vtos %v75
    %v77 = vstv %s76
    %78 = vst [vmem:[#allocation4] sm:$0x1] %v77
    // Predicated region
    $region10: #{tpu_custom_call.1} parent=1 // pred_check
      _
    $region11: #{tpu_custom_call.1} parent=1 // pred_check_branch
      %80 = sbr.rel (0) target = $region13
    $region12: #{tpu_custom_call.1} parent=1 // pred_region
      %82 = vsyncadd [#allocation3], 0
      %s84 = sshll.u32 [#allocation2], 4
      %s85 = int_to_ptr.vmem [resolvable:$true] %s84
      %s86 = sshll.u32 %s2, 4
      %s87 = int_to_ptr.hbm [resolvable:$true] %s86
      %89 = dma.vmem_to_hbm [thread:$0]  %s85, 16, %s87, [#allocation3]
    $region13: #{tpu_custom_call.1} parent=1 // pred_fallthru
      _
    // Predicated region
    $region14: #{tpu_custom_call.1} parent=1 // pred_check
      _
    $region15: #{tpu_custom_call.1} parent=1 // pred_check_branch
      %91 = sbr.rel (0) target = $region17
    $region16: #{tpu_custom_call.1} parent=1 // pred_region
      %93 = vsyncadd [#allocation5], 0
      %s95 = sshll.u32 [#allocation4], 4
      %s96 = int_to_ptr.vmem [resolvable:$true] %s95
      %s97 = sshll.u32 %s3, 4
      %s98 = int_to_ptr.hbm [resolvable:$true] %s97
      %100 = dma.vmem_to_hbm [thread:$0]  %s96, 16, %s98, [#allocation5]
    $region17: #{tpu_custom_call.1} parent=1 // pred_fallthru
      _
    // Predicated region
    $region18: #{tpu_custom_call.1} parent=1 // pred_check
      _
    $region19: #{tpu_custom_call.1} parent=1 // pred_check_branch
      %102 = sbr.rel (0) target = $region21
    $region20: #{tpu_custom_call.1} parent=1 // pred_region
      %104 = dma.done [#allocation3], 16
    $region21: #{tpu_custom_call.1} parent=1 // pred_fallthru
      _
    // Predicated region
    $region22: #{tpu_custom_call.1} parent=1 // pred_check
      _
    $region23: #{tpu_custom_call.1} parent=1 // pred_check_branch
      %106 = sbr.rel (0) target = $region25
    $region24: #{tpu_custom_call.1} parent=1 // pred_region
      %108 = dma.done [#allocation5], 16
    $region25: #{tpu_custom_call.1} parent=1 // pred_fallthru
      _
    %109 = vsyncpa [#allocation3], 1
    %110 = vsyncpa [#allocation5], 1

</llo_original>
